<compile_context>
chip_gen: v7x
topology: tpu7x:2x2x1
jax: 0.10.0
libtpu: 0.0.40
codegen_flags: <defaults>
</compile_context>

<pallas_src>
import jax
import jax.numpy as jnp
from jax import lax
from jax.experimental import pallas as pl
from jax.experimental.pallas import tpu as pltpu


def _round_up(x, m):
    return ((x + m - 1) // m) * m


def _col_tile(f):
    # Largest nice lane-aligned tile that divides f; fall back to full width.
    for c in (512, 256, 128):
        if f % c == 0:
            return c
    return f


# --------------------------------------------------------------------------
# Batched projection kernel: out = x @ W + b     (used for phases 1 and 3)
# --------------------------------------------------------------------------
def _proj_kernel(x_ref, w_ref, b_ref, o_ref):
    o_ref[...] = (
        jnp.dot(x_ref[...], w_ref[...], preferred_element_type=jnp.float32)
        + b_ref[...]
    ).astype(o_ref.dtype)


def _batched_projection(x2d, w, b, out_dtype, row_tile):
    """x2d: (N, Fi) bf16, w: (Fi, Fo) bf16, b: (1, Fo) f32 -> (N, Fo)."""
    N, Fi = x2d.shape
    Fo = w.shape[1]
    tf = _col_tile(Fo)
    return pl.pallas_call(
        _proj_kernel,
        out_shape=jax.ShapeDtypeStruct((N, Fo), out_dtype),
        grid_spec=pltpu.PrefetchScalarGridSpec(
            num_scalar_prefetch=0,
            grid=(N // row_tile, Fo // tf),
            in_specs=[
                pl.BlockSpec((row_tile, Fi), lambda i, j: (i, 0)),
                pl.BlockSpec((Fi, tf), lambda i, j: (0, j)),
                pl.BlockSpec((1, tf), lambda i, j: (0, j)),
            ],
            out_specs=pl.BlockSpec((row_tile, tf), lambda i, j: (i, j)),
        ),
        compiler_params=pltpu.CompilerParams(
            # fully parallel -> megacore / v7x second TC can pick this up
            dimension_semantics=("parallel", "parallel"),
            vmem_limit_bytes=32 * 1024 * 1024,
        ),
    )(x2d, w, b)


# --------------------------------------------------------------------------
# Serial recurrence kernel (only the truly sequential work lives here)
# --------------------------------------------------------------------------
def _lstm_recurrent_kernel(gin0_ref, whh0_ref, w1_ref, b1_ref, hs_ref,
                           h0, c0, h1, c1):
    tb = pl.program_id(0)

    @pl.when(tb == 0)
    def _():
        h0[...] = jnp.zeros_like(h0)
        c0[...] = jnp.zeros_like(c0)
        h1[...] = jnp.zeros_like(h1)
        c1[...] = jnp.zeros_like(c1)

    Tt = gin0_ref.shape[0]
    H = h0.shape[-1]

    def gates_to_hc(gates, c_prev):
        # gate order i, f, g, o (PyTorch LSTM convention)
        # NOTE: for aligned whole-vreg slices use H that is a multiple of 128.
        i_g = jax.nn.sigmoid(gates[:, 0 * H:1 * H])
        f_g = jax.nn.sigmoid(gates[:, 1 * H:2 * H])
        g_g = jnp.tanh(gates[:, 2 * H:3 * H])
        o_g = jax.nn.sigmoid(gates[:, 3 * H:4 * H])
        c_new = f_g * c_prev + i_g * g_g
        h_new = o_g * jnp.tanh(c_new)
        return h_new, c_new

    def step(s, carry):
        # layer 0: input projection is precomputed (phase 1); only Whh0 here.
        gates0 = gin0_ref[s] + jnp.dot(
            h0[...].astype(jnp.bfloat16), whh0_ref[...],
            preferred_element_type=jnp.float32)
        h0_new, c0_new = gates_to_hc(gates0, c0[...])
        h0[...] = h0_new
        c0[...] = c0_new

        # layer 1: single fused matmul with stacked [Wih1; Whh1].
        xh = jnp.concatenate([h0_new, h1[...]], axis=-1).astype(jnp.bfloat16)
        gates1 = jnp.dot(xh, w1_ref[...],
                         preferred_element_type=jnp.float32) + b1_ref[...]
        h1_new, c1_new = gates_to_hc(gates1, c1[...])
        h1[...] = h1_new
        c1[...] = c1_new

        hs_ref[s] = h1_new.astype(hs_ref.dtype)
        return carry

    lax.fori_loop(0, Tt, step, 0, unroll=True)


# --------------------------------------------------------------------------
# Forward wrapper (matches torch DecoderRNN.forward semantics)
# --------------------------------------------------------------------------
def decoder_rnn_forward(features, captions, params):
    """features: (B, E) f32, captions: (B, T) int32 -> (B, T, V) f32."""
    emb = params["embedding"]
    B, E = features.shape
    T = captions.shape[1]
    H = params["whh0"].shape[0]
    V = params["wout"].shape[1]

    # ---- glue (matches torch): embedding gather, prepend features, drop last
    embeds = emb[captions]                                                  # (B, T, E)
    x = jnp.concatenate([features[:, None, :], embeds], axis=1)[:, :-1, :]  # (B, T, E)

    # ---- TPU layout padding: sublane-dense batch, lane-dense vocab, T chunks
    Bp = _round_up(B, 8)
    Vp = _round_up(V, 128)
    Tt = min(T, 8)                      # timesteps fused per grid step
    Tp = _round_up(T, Tt)

    x = jnp.pad(x, ((0, Bp - B), (0, Tp - T), (0, 0)))
    x_tm = jnp.transpose(x, (1, 0, 2)).astype(jnp.bfloat16)                 # (Tp, Bp, E)

    # bf16 weights for the MXU; biases / accumulation / gate math stay f32.
    wih0 = params["wih0"].astype(jnp.bfloat16)
    whh0 = params["whh0"].astype(jnp.bfloat16)
    w1 = jnp.concatenate([params["wih1"], params["whh1"]],
                         axis=0).astype(jnp.bfloat16)                       # (2H, 4H)
    wout = jnp.pad(params["wout"], ((0, 0), (0, Vp - V))).astype(jnp.bfloat16)
    b0 = params["b0"].astype(jnp.float32)
    b1 = params["b1"].astype(jnp.float32)
    bout = jnp.pad(params["bout"], ((0, 0), (0, Vp - V))).astype(jnp.float32)

    N = Tp * Bp
    row_tile = Tt * Bp

    # ---- phase 1: hoisted layer-0 input projection over all T*B rows
    gin0 = _batched_projection(x_tm.reshape(N, E), wih0, b0,
                               jnp.float32, row_tile)                       # (N, 4H)
    gin0 = gin0.reshape(Tp, Bp, 4 * H)

    # ---- phase 2: serial recurrence (emits hidden states only)
    # TODO(synk): on v7x, single-buffer the constant-index weight blocks
    # (pl.Buffered(1)) once production H/V sizes make weight VMEM residency matter.
    hs = pl.pallas_call(
        _lstm_recurrent_kernel,
        out_shape=jax.ShapeDtypeStruct((Tp, Bp, H), jnp.bfloat16),
        grid_spec=pltpu.PrefetchScalarGridSpec(
            num_scalar_prefetch=0,
            grid=(Tp // Tt,),
            in_specs=[
                pl.BlockSpec((Tt, Bp, 4 * H), lambda tb: (tb, 0, 0)),  # gin0 chunk
                pl.BlockSpec((H, 4 * H), lambda tb: (0, 0)),           # Whh0
                pl.BlockSpec((2 * H, 4 * H), lambda tb: (0, 0)),       # [Wih1;Whh1]
                pl.BlockSpec((1, 4 * H), lambda tb: (0, 0)),           # b1
            ],
            out_specs=pl.BlockSpec((Tt, Bp, H), lambda tb: (tb, 0, 0)),
            scratch_shapes=[
                pltpu.VMEM((Bp, H), jnp.float32),   # h0
                pltpu.VMEM((Bp, H), jnp.float32),   # c0
                pltpu.VMEM((Bp, H), jnp.float32),   # h1
                pltpu.VMEM((Bp, H), jnp.float32),   # c1
            ],
        ),
        compiler_params=pltpu.CompilerParams(
            # state carried in scratch across the time axis -> must be arbitrary
            dimension_semantics=("arbitrary",),
            vmem_limit_bytes=32 * 1024 * 1024,
        ),
    )(gin0, whh0, w1, b1)

    # ---- phase 3: hoisted output projection over all T*B rows, lane-dense Vp
    logits = _batched_projection(hs.reshape(N, H), wout, bout,
                                 jnp.float32, row_tile)                     # (N, Vp)
    logits = logits.reshape(Tp, Bp, Vp)[:T, :B, :V]
    return jnp.transpose(logits, (1, 0, 2))                                 # (B, T, V)


# --------------------------------------------------------------------------
# Pure-JAX reference with identical bf16/f32 mixed-precision structure
# --------------------------------------------------------------------------
def _reference_forward(features, captions, params):
    emb = params["embedding"]
    embeds = emb[captions]
    x = jnp.concatenate([features[:, None, :], embeds], axis=1)[:, :-1, :]
    B, T, _ = x.shape
    H = params["whh0"].shape[0]

    wih0 = params["wih0"].astype(jnp.bfloat16)
    whh0 = params["whh0"].astype(jnp.bfloat16)
    w1 = jnp.concatenate([params["wih1"], params["whh1"]],
                         axis=0).astype(jnp.bfloat16)
    wout = params["wout"].astype(jnp.bfloat16)
    b0, b1, bout = params["b0"], params["b1"], params["bout"]

    x_bf = jnp.transpose(x, (1, 0, 2)).astype(jnp.bfloat16)   # (T, B, E)

    def gates_to_hc(g, c_prev):
        i = jax.nn.sigmoid(g[:, 0 * H:1 * H])
        f = jax.nn.sigmoid(g[:, 1 * H:2 * H])
        gg = jnp.tanh(g[:, 2 * H:3 * H])
        o = jax.nn.sigmoid(g[:, 3 * H:4 * H])
        c = f * c_prev + i * gg
        h = o * jnp.tanh(c)
        return h, c

    def step(carry, x_t):
        h0, c0, h1, c1 = carry
        g0 = (jnp.dot(x_t, wih0, preferred_element_type=jnp.float32) + b0
              + jnp.dot(h0.astype(jnp.bfloat16), whh0,
                        preferred_element_type=jnp.float32))
        h0, c0 = gates_to_hc(g0, c0)
        xh = jnp.concatenate([h0, h1], axis=-1).astype(jnp.bfloat16)
        g1 = jnp.dot(xh, w1, preferred_element_type=jnp.float32) + b1
        h1, c1 = gates_to_hc(g1, c1)
        return (h0, c0, h1, c1), h1.astype(jnp.bfloat16)

    z = jnp.zeros((B, H), jnp.float32)
    _, hs = lax.scan(step, (z, z, z, z), x_bf)                # hs: (T, B, H) bf16
    logits = (jnp.dot(hs.reshape(T * B, H), wout,
                      preferred_element_type=jnp.float32) + bout)
    return jnp.transpose(logits.reshape(T, B, -1), (1, 0, 2))


def init_params(key, embed_size, hidden_size, vocab_size):
    ks = jax.random.split(key, 10)
    s = 0.1
    E, H, V = embed_size, hidden_size, vocab_size
    return {
        "embedding": s * jax.random.normal(ks[0], (V, E), jnp.float32),
        "wih0": s * jax.random.normal(ks[1], (E, 4 * H), jnp.float32),
        "whh0": s * jax.random.normal(ks[2], (H, 4 * H), jnp.float32),
        "b0":   s * jax.random.normal(ks[3], (1, 4 * H), jnp.float32),
        "wih1": s * jax.random.normal(ks[4], (H, 4 * H), jnp.float32),
        "whh1": s * jax.random.normal(ks[5], (H, 4 * H), jnp.float32),
        "b1":   s * jax.random.normal(ks[6], (1, 4 * H), jnp.float32),
        "wout": s * jax.random.normal(ks[7], (H, V), jnp.float32),
        "bout": s * jax.random.normal(ks[8], (1, V), jnp.float32),
    }


if __name__ == "__main__":
    B, T = 2, 8
    embed_size, hidden_size, vocab_size = 32, 32, 64

    key = jax.random.PRNGKey(0)
    k_feat, k_cap, k_par = jax.random.split(key, 3)

    features = jax.random.normal(k_feat, (B, embed_size), jnp.float32)
    captions = jax.random.randint(k_cap, (B, T), 0, vocab_size, jnp.int32)
    params = init_params(k_par, embed_size, hidden_size, vocab_size)

    out = decoder_rnn_forward(features, captions, params)
    out = jax.block_until_ready(out)

    ref = _reference_forward(features, captions, params)
    assert out.shape == (B, T, vocab_size)
    assert jnp.allclose(out, ref, atol=1e-2, rtol=1e-2), "mismatch vs reference"

    print("KERNEL_OK")
</pallas_src>

<mosaic_0001>
module attributes {stable_mosaic.version = 11 : i64} {
  func.func @_proj_kernel(%arg0: i32, %arg1: i32, %arg2: memref<64x32xbf16, #tpu.memory_space<vmem>>, %arg3: memref<32x128xbf16, #tpu.memory_space<vmem>>, %arg4: memref<1x128xf32, #tpu.memory_space<vmem>>, %arg5: memref<64x128xf32, #tpu.memory_space<vmem>>) attributes {dimension_semantics = [#tpu.dimension_semantics<parallel>, #tpu.dimension_semantics<parallel>], iteration_bounds = array<i64: 1, 1>, scalar_prefetch = 0 : i64, scratch_operands = 0 : i64, tpu.core_type = #tpu.core_type<tc>, window_params = [{transform_indices = @transform_0, window_bounds = array<i64: 64, 32>}, {transform_indices = @transform_1, window_bounds = array<i64: 32, 128>}, {transform_indices = @transform_2, window_bounds = array<i64: 1, 128>}, {transform_indices = @transform_3, window_bounds = array<i64: 64, 128>}]} {
    %c0 = arith.constant 0 : index
    %c0_0 = arith.constant 0 : index
    %0 = vector.load %arg2[%c0, %c0_0] : memref<64x32xbf16, #tpu.memory_space<vmem>>, vector<64x32xbf16>
    %c0_1 = arith.constant 0 : index
    %c0_2 = arith.constant 0 : index
    %1 = vector.load %arg3[%c0_1, %c0_2] : memref<32x128xbf16, #tpu.memory_space<vmem>>, vector<32x128xbf16>
    %cst = arith.constant dense<0.000000e+00> : vector<64x128xf32>
    %2 = tpu.matmul %0, %1, %cst {dimension_numbers = #tpu.dot_dimension_numbers<[1], [0], [0], [1], [0, 0, 1, 1], [], []>} : vector<64x32xbf16>, vector<32x128xbf16>, vector<64x128xf32> -> vector<64x128xf32>
    %c0_3 = arith.constant 0 : index
    %c0_4 = arith.constant 0 : index
    %3 = vector.load %arg4[%c0_3, %c0_4] : memref<1x128xf32, #tpu.memory_space<vmem>>, vector<1x128xf32>
    %4 = vector.broadcast %3 : vector<1x128xf32> to vector<64x128xf32>
    %5 = arith.addf %2, %4 : vector<64x128xf32>
    %c0_5 = arith.constant 0 : index
    %c0_6 = arith.constant 0 : index
    %6 = vector.load %arg5[%c0_5, %c0_6] : memref<64x128xf32, #tpu.memory_space<vmem>>, vector<64x128xf32>
    tpu.vector_store %arg5[%c0_5, %c0_6], %5 {strides = array<i32>} : memref<64x128xf32, #tpu.memory_space<vmem>>, vector<64x128xf32>,
    return
  }
  func.func @transform_0(%arg0: i32, %arg1: i32) -> (i32, i32) {
    %c0_i32 = arith.constant 0 : i32
    %c0_i32_0 = arith.constant 0 : i32
    return %arg0, %c0_i32 : i32, i32
  }
  func.func @transform_1(%arg0: i32, %arg1: i32) -> (i32, i32) {
    %c0_i32 = arith.constant 0 : i32
    %c0_i32_0 = arith.constant 0 : i32
    return %c0_i32, %arg1 : i32, i32
  }
  func.func @transform_2(%arg0: i32, %arg1: i32) -> (i32, i32) {
    %c0_i32 = arith.constant 0 : i32
    %c0_i32_0 = arith.constant 0 : i32
    return %c0_i32, %arg1 : i32, i32
  }
  func.func @transform_3(%arg0: i32, %arg1: i32) -> (i32, i32) {
    %c0_i32 = arith.constant 0 : i32
    return %arg0, %arg1 : i32, i32
  }
}

</mosaic_0001>

<llo_original>
// kernel: tpu_custom_call.1
$region0: #{tpu_custom_call.1}
  #allocation0 [shape = 'u32[]', space=smem, size = 0x4, offset = 0x4, fixed_abs, tag = 'smem constant byte address 0x4 - core index']
  #allocation1 [shape = 'u32[144,128]{1,0:T(1,128)}', space=vmem, size = 0x12000, scoped, tag = 'internal scratch']
  %s0 = inlined_call_operand.vmem [shape: bf16[64,32], index: 0, kind: input, shape index: {}]
  %s1 = inlined_call_operand.vmem [shape: bf16[32,128], index: 1, kind: input, shape index: {}]
  %s2 = inlined_call_operand.vmem [shape: f32[1,128], index: 2, kind: input, shape index: {}]
  %s3 = inlined_call_operand.hbm [shape: f32[64,128], index: 3, kind: output, shape index: {}]
  %s4 = sld [smem:[#allocation0]]
  $region22: #{tpu_custom_call.1} parent=0
    _
  %s6 = ssub.s32 1, %s4
  %s7 = scalar_select 0, %s6, %s4
  $region1: #{tpu_custom_call.1} parent=0
    #allocation2 [shape = 'u8[32768]{0}', space=vmem, size = 0x8000, scoped, tag = 'output window, operand 0, single buffered']
    #allocation3 [shape = 's32[1]{0}', space=sflag, size = 0x4, scoped, tag = 'scoped memory for tpu_custom_call.1']
    %8 = vsyncpa [#allocation3], 0
    // Predicated region
    $region2: #{tpu_custom_call.1} parent=1 // pred_check
      _
    $region3: #{tpu_custom_call.1} parent=1 // pred_check_branch
      %10 = sbr.rel (0) target = $region5
    $region4: #{tpu_custom_call.1} parent=1 // pred_region
      _
    $region5: #{tpu_custom_call.1} parent=1 // pred_fallthru
      _
    // Predicated region
    $region6: #{tpu_custom_call.1} parent=1 // pred_check
      _
    $region7: #{tpu_custom_call.1} parent=1 // pred_check_branch
      %12 = sbr.rel (0) target = $region9
    $region8: #{tpu_custom_call.1} parent=1 // pred_region
      _
    $region9: #{tpu_custom_call.1} parent=1 // pred_fallthru
      _
    // Predicated region
    $region10: #{tpu_custom_call.1} parent=1 // pred_check
      _
    $region11: #{tpu_custom_call.1} parent=1 // pred_check_branch
      %14 = sbr.rel (0) target = $region13
    $region12: #{tpu_custom_call.1} parent=1 // pred_region
      _
    $region13: #{tpu_custom_call.1} parent=1 // pred_fallthru
      _
    %v16 = vld [vmem:[%s0] sm:$0xf]
    %v17 = vld [vmem:[%s0 + $0x4] sm:$0xf]
    %v18 = vld [vmem:[%s0 + $0x8] sm:$0xf]
    %v19 = vld [vmem:[%s0 + $0xc] sm:$0xf]
    %v20 = vld [vmem:[%s0 + $0x10] sm:$0xf]
    %v21 = vld [vmem:[%s0 + $0x14] sm:$0xf]
    %v22 = vld [vmem:[%s0 + $0x18] sm:$0xf]
    %v23 = vld [vmem:[%s0 + $0x1c] sm:$0xf]
    %v24 = vld [vmem:[%s1] sm:$0xf]
    %v25 = vld [vmem:[%s1 + $0x4] sm:$0xf]
    %v26 = vld [vmem:[%s1 + $0x8] sm:$0xf]
    %v27 = vld [vmem:[%s1 + $0xc] sm:$0xf]
    %v28 = vld [vmem:[%s2] sm:$0x1]
    %v30 = vlaneseq
    %v31 = vshrl.u32 %v30, 7
    %v32 = vsub.s32 0, %v31
    %v33 = vrot.slane %v28, %v32
    %v43 = vunpack.c.l.b16 %v16
    %v44 = vunpack.c.l.b16 %v17
    %v45 = vunpack.c.l.b16 %v18
    %v46 = vunpack.c.l.b16 %v19
    %v47 = vunpack.c.l.b16 %v20
    %v48 = vunpack.c.l.b16 %v21
    %v49 = vunpack.c.l.b16 %v22
    %v50 = vunpack.c.l.b16 %v23
    %v51 = vpack.c.b16 %v44, %v43
    %v52 = vpack.c.b16 %v46, %v45
    %v53 = vpack.c.b16 %v48, %v47
    %v54 = vpack.c.b16 %v50, %v49
    %v59 = vunpack.c.l.b16 %v24
    %v60 = vunpack.c.l.b16 %v25
    %v61 = vunpack.c.l.b16 %v26
    %v62 = vunpack.c.l.b16 %v27
    %v63 = vpack.c.b16 %v60, %v59
    %v64 = vpack.c.b16 %v62, %v61
    %vm67 = vcmask 261120
    %v69 = vsel %vm67, %v51, 0
    %v72 = vsel %vm67, %v52, 0
    %v75 = vsel %vm67, %v53, 0
    %v78 = vsel %vm67, %v54, 0
    %80 = vmatprep.subr.bf16.mxu0 0
    %81 = vmatpush1.bf16.msra.mxu0 %v63
    %82 = vmatprep.subr.bf16.mxu0 0
    %83 = vmatpush1.bf16.msra.mxu0 %v64
    %84 = vmatprep.subr.bf16.mxu0 0
    %85 = vmatpush1.bf16.msra.mxu0 0
    %86 = vmatprep.subr.bf16.mxu0 0
    %87 = vmatpush1.bf16.msra.mxu0 0
    %88 = vmatprep.subr.bf16.mxu0 0
    %89 = vmatpush1.bf16.msra.mxu0 0
    %90 = vmatprep.subr.bf16.mxu0 0
    %91 = vmatpush1.bf16.msra.mxu0 0
    %92 = vmatprep.subr.bf16.mxu0 0
    %93 = vmatpush1.bf16.msra.mxu0 0
    %94 = vmatprep.subr.bf16.mxu0 0
    %95 = vmatpush1.bf16.msra.mxu0 0
    %96 = vmatprep.subr.bf16.mxu0 0
    %97 = vmatpush1.bf16.msra.mxu0 0
    %98 = vmatprep.subr.bf16.mxu0 0
    %99 = vmatpush1.bf16.msra.mxu0 0
    %100 = vmatprep.subr.bf16.mxu0 0
    %101 = vmatpush1.bf16.msra.mxu0 0
    %102 = vmatprep.subr.bf16.mxu0 0
    %103 = vmatpush1.bf16.msra.mxu0 0
    %104 = vmatprep.subr.bf16.mxu0 0
    %105 = vmatpush1.bf16.msra.mxu0 0
    %106 = vmatprep.subr.bf16.mxu0 0
    %107 = vmatpush1.bf16.msra.mxu0 0
    %108 = vmatprep.subr.bf16.mxu0 0
    %109 = vmatpush1.bf16.msra.mxu0 0
    %110 = vmatprep.subr.bf16.mxu0 0
    %111 = vmatpush1.bf16.msra.mxu0 0
    %112 = vmatprep.mubr.bf16.mxu0 0
    %113 = vmatmul.mubr.bf16.gmra.mrb[0].mxu0 %v69
    %v114 = vpop.f32.mrb[0].mxu0
    %v115 = vadd.f32 %v33, %v114
    %v116 = vpop.f32.mrb[0].mxu0
    %v117 = vpop.f32.mrb[0].mxu0
    %v118 = vadd.f32 %v33, %v117
    %v119 = vpop.f32.mrb[0].mxu0
    %120 = vmatprep.mubr.bf16.mxu0 0
    %121 = vmatmul.mubr.bf16.gmra.mrb[0].mxu0 %v72
    %v122 = vpop.f32.mrb[0].mxu0
    %v123 = vadd.f32 %v33, %v122
    %v124 = vpop.f32.mrb[0].mxu0
    %v125 = vpop.f32.mrb[0].mxu0
    %v126 = vadd.f32 %v33, %v125
    %v127 = vpop.f32.mrb[0].mxu0
    %128 = vmatprep.mubr.bf16.mxu0 0
    %129 = vmatmul.mubr.bf16.gmra.mrb[0].mxu0 %v75
    %v130 = vpop.f32.mrb[0].mxu0
    %v131 = vadd.f32 %v33, %v130
    %v132 = vpop.f32.mrb[0].mxu0
    %v133 = vpop.f32.mrb[0].mxu0
    %v134 = vadd.f32 %v33, %v133
    %v135 = vpop.f32.mrb[0].mxu0
    %136 = vmatprep.mubr.bf16.mxu0 0
    %137 = vmatmul.mubr.bf16.gmra.mrb[0].mxu0 %v78
    %v138 = vpop.f32.mrb[0].mxu0
    %v139 = vadd.f32 %v33, %v138
    %v140 = vpop.f32.mrb[0].mxu0
    %v141 = vpop.f32.mrb[0].mxu0
    %v142 = vadd.f32 %v33, %v141
    %v143 = vpop.f32.mrb[0].mxu0
    %144 = vdwg.mxu0
    %145 = vst [vmem:[#allocation2] sm:$0xff] %v115
    %146 = vst [vmem:[#allocation2 + $0x8] sm:$0xff] %v118
    %147 = vst [vmem:[#allocation2 + $0x10] sm:$0xff] %v123
    %148 = vst [vmem:[#allocation2 + $0x18] sm:$0xff] %v126
    %149 = vst [vmem:[#allocation2 + $0x20] sm:$0xff] %v131
    %150 = vst [vmem:[#allocation2 + $0x28] sm:$0xff] %v134
    %151 = vst [vmem:[#allocation2 + $0x30] sm:$0xff] %v139
    %152 = vst [vmem:[#allocation2 + $0x38] sm:$0xff] %v142
    // Predicated region
    $region14: #{tpu_custom_call.1} parent=1 // pred_check
      _
    $region15: #{tpu_custom_call.1} parent=1 // pred_check_branch
      %154 = sbr.rel (0) target = $region17
    $region16: #{tpu_custom_call.1} parent=1 // pred_region
      %s156 = ssub.s32 1024, 1024
      %157 = vsyncadd [#allocation3], %s156
      %s158 = sshll.u32 [#allocation2], 4
      %s159 = int_to_ptr.vmem [resolvable:$true] %s158
      %164 = dma.vmem_to_hbm [thread:$0]  %s159, 1024, %s3, [#allocation3], 128, 128, 8
    $region17: #{tpu_custom_call.1} parent=1 // pred_fallthru
      _
    // Predicated region
    $region18: #{tpu_custom_call.1} parent=1 // pred_check
      _
    $region19: #{tpu_custom_call.1} parent=1 // pred_check_branch
      %166 = sbr.rel (0) target = $region21
    $region20: #{tpu_custom_call.1} parent=1 // pred_region
      %167 = dma.done [#allocation3], 1024
    $region21: #{tpu_custom_call.1} parent=1 // pred_fallthru
      _
    %168 = vsyncpa [#allocation3], 1

</llo_original>
